<compile_context>
chip_gen: v7x
topology: tpu7x:2x2x1
jax: 0.10.0
libtpu: 0.0.40
codegen_flags: <defaults>
</compile_context>

<pallas_src>
import functools

import jax
import jax.numpy as jnp
from jax.experimental import pallas as pl
from jax.experimental.pallas import tpu as pltpu

EPS = 1e-5
FUSED_MAX_N = 16384      # whole-batch-in-VMEM threshold (fits v5e 16 MiB scoped)
_FEAT_PAD = 16           # input feature dim padded 11 -> 16

# Packed-parameter layout: one (256, 32) f32 buffer; every block starts on an
# 8-aligned sublane row and contraction dims are zero-padded to 8-multiples.
# name -> (row_start, rows, cols)
_PACK_SHAPE = (256, 32)
_OFF = {
    "w_in":  (0,   16, 16),   # Linear(11 -> 16), (out, in) padded in-cols 11->16
    "w1":    (16,  32, 16),   # Linear(16 -> 32)
    "w2":    (48,  24, 32),   # Linear(32 -> 20), out-rows padded 20->24
    "w_out": (72,  1,  24),   # Linear(20 -> 1),  in-cols padded 20->24
    "b_in":  (80,  16, 1),
    "b1":    (96,  32, 1),
    "b2":    (128, 24, 1),    # rows padded 20->24 (zeros)
    "b_out": (152, 1,  1),
    "g1":    (160, 16, 1),    # BatchNorm1d(16) gamma
    "be1":   (176, 16, 1),    # BatchNorm1d(16) beta
    "g2":    (192, 32, 1),    # BatchNorm1d(32) gamma
    "be2":   (224, 32, 1),    # BatchNorm1d(32) beta
}

_DN_FEAT = (((1,), (1,)), ((), ()))   # contract trailing feature dim of x


def _p(p_ref, name):
    """Static slice of the packed parameter buffer."""
    r0, nr, nc = _OFF[name]
    return p_ref[r0:r0 + nr, 0:nc]


def _layer1(p_ref, x):
    """relu(W_in @ x^T + b_in): x is (tile, 16) batch-major -> (16, tile)."""
    h = jax.lax.dot_general(_p(p_ref, "w_in"), x, dimension_numbers=_DN_FEAT,
                            preferred_element_type=jnp.float32) + _p(p_ref, "b_in")
    return jnp.maximum(h, 0.0)


# -----------------------------------------------------------------------------
# Fused single-block kernel: whole batch in VMEM, BN stats computed in-kernel
# with centered variance.  One launch, one HBM read of x, one param DMA.
# -----------------------------------------------------------------------------
def _fused_kernel(do_bn, n_true, p_ref, x_ref, out_ref):
    n_pad = x_ref.shape[0]
    h = _layer1(p_ref, x_ref[...])                                  # (16, n_pad)

    if do_bn:
        col = jax.lax.broadcasted_iota(jnp.int32, (1, n_pad), 1)
        mask = col < n_true
        inv_n = 1.0 / n_true

        def batchnorm(hh, gamma, beta):
            hm = jnp.where(mask, hh, 0.0)
            mean = jnp.sum(hm, axis=1, keepdims=True) * inv_n
            d = jnp.where(mask, hh - mean, 0.0)
            var = jnp.sum(d * d, axis=1, keepdims=True) * inv_n     # biased var
            scale = gamma * jax.lax.rsqrt(var + EPS)
            return hh * scale + (beta - mean * scale)

        h = batchnorm(h, _p(p_ref, "g1"), _p(p_ref, "be1"))

    h = jnp.maximum(jnp.dot(_p(p_ref, "w1"), h,
                            preferred_element_type=jnp.float32) + _p(p_ref, "b1"),
                    0.0)                                             # (32, n_pad)
    if do_bn:
        h = batchnorm(h, _p(p_ref, "g2"), _p(p_ref, "be2"))

    h = jnp.maximum(jnp.dot(_p(p_ref, "w2"), h,
                            preferred_element_type=jnp.float32) + _p(p_ref, "b2"),
                    0.0)                                             # (24, n_pad)
    out_ref[...] = jnp.dot(_p(p_ref, "w_out"), h,
                           preferred_element_type=jnp.float32) + _p(p_ref, "b_out")


# -----------------------------------------------------------------------------
# Tiled fallback (n > FUSED_MAX_N): stats pass 1 -> stats pass 2 -> forward.
# -----------------------------------------------------------------------------
def _stats1_kernel(n_true, p_ref, x_ref, s1_ref, t1_ref, sum_acc, sq_acc):
    i = pl.program_id(0)
    last = pl.num_programs(0) - 1
    tile = x_ref.shape[0]

    @pl.when(i == 0)
    def _():
        sum_acc[...] = jnp.zeros_like(sum_acc)
        sq_acc[...] = jnp.zeros_like(sq_acc)

    h = _layer1(p_ref, x_ref[...])                                  # (16, tile)

    @pl.when(i < last)
    def _():
        sum_acc[...] += jnp.sum(h, axis=1, keepdims=True)
        sq_acc[...] += jnp.sum(h * h, axis=1, keepdims=True)

    @pl.when(i == last)   # mask only the last (possibly partial) tile
    def _():
        col = i * tile + jax.lax.broadcasted_iota(jnp.int32, (1, tile), 1)
        hm = jnp.where(col < n_true, h, 0.0)
        s = sum_acc[...] + jnp.sum(hm, axis=1, keepdims=True)
        q = sq_acc[...] + jnp.sum(hm * hm, axis=1, keepdims=True)
        inv_n = 1.0 / n_true
        mean = s * inv_n
        var = jnp.maximum(q * inv_n - mean * mean, 0.0)
        scale = _p(p_ref, "g1") * jax.lax.rsqrt(var + EPS)
        s1_ref[...] = scale
        t1_ref[...] = _p(p_ref, "be1") - mean * scale


def _stats2_kernel(n_true, p_ref, x_ref, s1_ref, t1_ref, s2_ref, t2_ref,
                   sum_acc, sq_acc):
    i = pl.program_id(0)
    last = pl.num_programs(0) - 1
    tile = x_ref.shape[0]

    @pl.when(i == 0)
    def _():
        sum_acc[...] = jnp.zeros_like(sum_acc)
        sq_acc[...] = jnp.zeros_like(sq_acc)

    h = _layer1(p_ref, x_ref[...])
    h = h * s1_ref[...] + t1_ref[...]
    h = jnp.maximum(jnp.dot(_p(p_ref, "w1"), h,
                            preferred_element_type=jnp.float32) + _p(p_ref, "b1"),
                    0.0)                                             # (32, tile)

    @pl.when(i < last)
    def _():
        sum_acc[...] += jnp.sum(h, axis=1, keepdims=True)
        sq_acc[...] += jnp.sum(h * h, axis=1, keepdims=True)

    @pl.when(i == last)
    def _():
        col = i * tile + jax.lax.broadcasted_iota(jnp.int32, (1, tile), 1)
        hm = jnp.where(col < n_true, h, 0.0)
        s = sum_acc[...] + jnp.sum(hm, axis=1, keepdims=True)
        q = sq_acc[...] + jnp.sum(hm * hm, axis=1, keepdims=True)
        inv_n = 1.0 / n_true
        mean = s * inv_n
        var = jnp.maximum(q * inv_n - mean * mean, 0.0)
        scale = _p(p_ref, "g2") * jax.lax.rsqrt(var + EPS)
        s2_ref[...] = scale
        t2_ref[...] = _p(p_ref, "be2") - mean * scale


def _fwd_kernel(do_bn, *refs):
    if do_bn:
        p_ref, x_ref, s1_ref, t1_ref, s2_ref, t2_ref, out_ref = refs
    else:
        p_ref, x_ref, out_ref = refs

    h = _layer1(p_ref, x_ref[...])
    if do_bn:
        h = h * s1_ref[...] + t1_ref[...]
    h = jnp.maximum(jnp.dot(_p(p_ref, "w1"), h,
                            preferred_element_type=jnp.float32) + _p(p_ref, "b1"),
                    0.0)
    if do_bn:
        h = h * s2_ref[...] + t2_ref[...]
    h = jnp.maximum(jnp.dot(_p(p_ref, "w2"), h,
                            preferred_element_type=jnp.float32) + _p(p_ref, "b2"),
                    0.0)
    out_ref[...] = jnp.dot(_p(p_ref, "w_out"), h,
                           preferred_element_type=jnp.float32) + _p(p_ref, "b_out")


# -----------------------------------------------------------------------------
# Host-side wrappers
# -----------------------------------------------------------------------------
def pack_params(params):
    """Pack all 12 tensors into one (256, 32) f32 buffer (done once, off the
    hot path).  Weights stay in PyTorch (out, in) layout; contraction dims are
    zero-padded to 8-multiples."""
    buf = jnp.zeros(_PACK_SHAPE, jnp.float32)
    for name, (r0, nr, nc) in _OFF.items():
        v = jnp.asarray(params[name], jnp.float32)
        if v.ndim == 1:
            v = v[:, None]
        v = jnp.pad(v, ((0, nr - v.shape[0]), (0, nc - v.shape[1])))
        buf = buf.at[r0:r0 + nr, 0:nc].set(v)
    return buf


@functools.partial(jax.jit, static_argnames=("do_bn", "fused_max_n", "tile_n"))
def ann_wine_forward(packed_params, x, do_bn, fused_max_n=FUSED_MAX_N,
                     tile_n=4096):
    """Forward pass. packed_params: (256, 32) from pack_params; x: (N, 11) f32.
    Returns (N, 1) f32."""
    n = x.shape[0]
    x = x.astype(jnp.float32)
    param_spec = pl.BlockSpec(_PACK_SHAPE, lambda i: (0, 0))

    if n <= fused_max_n:
        # ---- fused single-block path ----
        n_pad = max(128, ((n + 127) // 128) * 128)      # lane-dense batch dim
        xp = jnp.pad(x, ((0, n_pad - n), (0, _FEAT_PAD - 11)))
        out = pl.pallas_call(
            functools.partial(_fused_kernel, do_bn, n),
            grid=(1,),
            in_specs=[param_spec,
                      pl.BlockSpec((n_pad, _FEAT_PAD), lambda i: (0, 0))],
            out_specs=pl.BlockSpec((1, n_pad), lambda i: (0, 0)),
            out_shape=jax.ShapeDtypeStruct((1, n_pad), jnp.float32),
            compiler_params=pltpu.CompilerParams(
                dimension_semantics=("arbitrary",)),
        )(packed_params, xp)
        return out[0, :n].reshape(n, 1)

    # ---- tiled fallback for very large batches ----
    tile = tile_n                                        # multiple of 256
    n_pad = ((n + tile - 1) // tile) * tile
    xp = jnp.pad(x, ((0, n_pad - n), (0, _FEAT_PAD - 11)))
    num_tiles = n_pad // tile

    x_spec = pl.BlockSpec((tile, _FEAT_PAD), lambda i: (i, 0))
    out_spec = pl.BlockSpec((1, tile), lambda i: (0, i))
    vec16 = pl.BlockSpec((16, 1), lambda i: (0, 0))
    vec32 = pl.BlockSpec((32, 1), lambda i: (0, 0))

    seq_cp = pltpu.CompilerParams(dimension_semantics=("arbitrary",))
    par_cp = pltpu.CompilerParams(dimension_semantics=("parallel",))

    if do_bn:
        s1, t1 = pl.pallas_call(
            functools.partial(_stats1_kernel, n),
            grid=(num_tiles,),
            in_specs=[param_spec, x_spec],
            out_specs=(vec16, vec16),
            out_shape=(jax.ShapeDtypeStruct((16, 1), jnp.float32),
                       jax.ShapeDtypeStruct((16, 1), jnp.float32)),
            scratch_shapes=[pltpu.VMEM((16, 1), jnp.float32),
                            pltpu.VMEM((16, 1), jnp.float32)],
            compiler_params=seq_cp,
        )(packed_params, xp)

        s2, t2 = pl.pallas_call(
            functools.partial(_stats2_kernel, n),
            grid=(num_tiles,),
            in_specs=[param_spec, x_spec, vec16, vec16],
            out_specs=(vec32, vec32),
            out_shape=(jax.ShapeDtypeStruct((32, 1), jnp.float32),
                       jax.ShapeDtypeStruct((32, 1), jnp.float32)),
            scratch_shapes=[pltpu.VMEM((32, 1), jnp.float32),
                            pltpu.VMEM((32, 1), jnp.float32)],
            compiler_params=seq_cp,
        )(packed_params, xp, s1, t1)

        out = pl.pallas_call(
            functools.partial(_fwd_kernel, True),
            grid=(num_tiles,),
            in_specs=[param_spec, x_spec, vec16, vec16, vec32, vec32],
            out_specs=out_spec,
            out_shape=jax.ShapeDtypeStruct((1, n_pad), jnp.float32),
            compiler_params=par_cp,
        )(packed_params, xp, s1, t1, s2, t2)
    else:
        out = pl.pallas_call(
            functools.partial(_fwd_kernel, False),
            grid=(num_tiles,),
            in_specs=[param_spec, x_spec],
            out_specs=out_spec,
            out_shape=jax.ShapeDtypeStruct((1, n_pad), jnp.float32),
            compiler_params=par_cp,
        )(packed_params, xp)

    return out[0, :n].reshape(n, 1)


def init_params(key):
    """PyTorch-default-style init; Linear weights stored (out, in)."""
    def linear(key, fan_in, fan_out):
        k_w, k_b = jax.random.split(key)
        bound = fan_in ** -0.5
        w = jax.random.uniform(k_w, (fan_out, fan_in), jnp.float32, -bound, bound)
        b = jax.random.uniform(k_b, (fan_out,), jnp.float32, -bound, bound)
        return w, b

    k0, k1, k2, k3 = jax.random.split(key, 4)
    w_in, b_in = linear(k0, 11, 16)
    w1, b1 = linear(k1, 16, 32)
    w2, b2 = linear(k2, 32, 20)
    w_out, b_out = linear(k3, 20, 1)
    return {
        "w_in": w_in, "b_in": b_in, "w1": w1, "b1": b1,
        "w2": w2, "b2": b2, "w_out": w_out, "b_out": b_out,
        "g1": jnp.ones((16,), jnp.float32), "be1": jnp.zeros((16,), jnp.float32),
        "g2": jnp.ones((32,), jnp.float32), "be2": jnp.zeros((32,), jnp.float32),
    }


def reference_forward(params, x, do_bn):
    """Pure-JAX mirror of the PyTorch module (training-mode BatchNorm)."""
    def bn(h, g, be):
        mean = jnp.mean(h, axis=0, keepdims=True)
        var = jnp.mean((h - mean) ** 2, axis=0, keepdims=True)
        return (h - mean) * jax.lax.rsqrt(var + EPS) * g + be

    h = jnp.maximum(x @ params["w_in"].T + params["b_in"], 0.0)
    if do_bn:
        h = bn(h, params["g1"], params["be1"])
    h = jnp.maximum(h @ params["w1"].T + params["b1"], 0.0)
    if do_bn:
        h = bn(h, params["g2"], params["be2"])
    h = jnp.maximum(h @ params["w2"].T + params["b2"], 0.0)
    return h @ params["w_out"].T + params["b_out"]


if __name__ == "__main__":
    key = jax.random.PRNGKey(0)
    k_params, k_x, k_x2 = jax.random.split(key, 3)
    params = init_params(k_params)
    packed = pack_params(params)            # packed once, reused across calls

    # small case (fused single-block path)
    batch = 16
    x = jax.random.normal(k_x, (batch, 11), jnp.float32)
    out_bn = ann_wine_forward(packed, x, do_bn=True)
    out_nobn = ann_wine_forward(packed, x, do_bn=False)
    jax.block_until_ready((out_bn, out_nobn))
    assert out_bn.shape == (batch, 1) and out_nobn.shape == (batch, 1)
    assert jnp.allclose(out_bn, reference_forward(params, x, True),
                        atol=1e-3, rtol=1e-3)
    assert jnp.allclose(out_nobn, reference_forward(params, x, False),
                        atol=1e-3, rtol=1e-3)

    # larger case, still fused
    batch2 = 600
    x2 = jax.random.normal(k_x2, (batch2, 11), jnp.float32)
    out2_bn = ann_wine_forward(packed, x2, do_bn=True)
    out2_nobn = ann_wine_forward(packed, x2, do_bn=False)
    jax.block_until_ready((out2_bn, out2_nobn))
    assert out2_bn.shape == (batch2, 1) and out2_nobn.shape == (batch2, 1)
    assert jnp.allclose(out2_bn, reference_forward(params, x2, True),
                        atol=1e-3, rtol=1e-3)
    assert jnp.allclose(out2_nobn, reference_forward(params, x2, False),
                        atol=1e-3, rtol=1e-3)

    # exercise the large-N tiled fallback at small scale (force it)
    out3_bn = ann_wine_forward(packed, x2, do_bn=True, fused_max_n=0, tile_n=256)
    out3_nobn = ann_wine_forward(packed, x2, do_bn=False, fused_max_n=0, tile_n=256)
    jax.block_until_ready((out3_bn, out3_nobn))
    assert jnp.allclose(out3_bn, reference_forward(params, x2, True),
                        atol=1e-3, rtol=1e-3)
    assert jnp.allclose(out3_nobn, reference_forward(params, x2, False),
                        atol=1e-3, rtol=1e-3)

    print("KERNEL_OK")
</pallas_src>

<mosaic_0001>
module attributes {stable_mosaic.version = 11 : i64} {
  func.func @_fused_kernel(%arg0: i32, %arg1: memref<256x32xf32, #tpu.memory_space<vmem>>, %arg2: memref<128x16xf32, #tpu.memory_space<vmem>>, %arg3: memref<1x128xf32, #tpu.memory_space<vmem>>) attributes {dimension_semantics = [#tpu.dimension_semantics<arbitrary>], iteration_bounds = array<i64: 1>, scalar_prefetch = 0 : i64, scratch_operands = 0 : i64, tpu.core_type = #tpu.core_type<tc>, window_params = [{pipeline_mode = #tpu.pipeline_mode<synchronous>, transform_indices = @transform_0, window_bounds = array<i64: 256, 32>}, {pipeline_mode = #tpu.pipeline_mode<synchronous>, transform_indices = @transform_1, window_bounds = array<i64: 128, 16>}, {pipeline_mode = #tpu.pipeline_mode<synchronous>, transform_indices = @transform_2, window_bounds = array<i64: 1, 128>}]} {
    %c0 = arith.constant 0 : index
    %c0_0 = arith.constant 0 : index
    %0 = vector.load %arg2[%c0, %c0_0] : memref<128x16xf32, #tpu.memory_space<vmem>>, vector<128x16xf32>
    %c0_1 = arith.constant 0 : index
    %c0_2 = arith.constant 0 : index
    %1 = vector.load %arg1[%c0_1, %c0_2] : memref<256x32xf32, #tpu.memory_space<vmem>>, vector<16x16xf32>
    %cst = arith.constant dense<0.000000e+00> : vector<16x128xf32>
    %2 = tpu.matmul %1, %0, %cst {dimension_numbers = #tpu.dot_dimension_numbers<[1], [1], [0], [0], [0, 0, 1, 0], [], []>} : vector<16x16xf32>, vector<128x16xf32>, vector<16x128xf32> -> vector<16x128xf32>
    %c80 = arith.constant 80 : index
    %c0_3 = arith.constant 0 : index
    %3 = vector.load %arg1[%c80, %c0_3] : memref<256x32xf32, #tpu.memory_space<vmem>>, vector<16x1xf32>
    %4 = vector.broadcast %3 : vector<16x1xf32> to vector<16x128xf32>
    %5 = arith.addf %2, %4 : vector<16x128xf32>
    %cst_4 = arith.constant 0.000000e+00 : f32
    %6 = vector.broadcast %cst_4 : f32 to vector<16x128xf32>
    %7 = arith.maximumf %5, %6 : vector<16x128xf32>
    %8 = tpu.iota {dimensions = array<i32: 1>} : vector<1x128xi32>
    %c16_i32 = arith.constant 16 : i32
    %9 = vector.broadcast %c16_i32 : i32 to vector<1x128xi32>
    %10 = arith.cmpi slt, %8, %9 : vector<1x128xi32>
    %c160 = arith.constant 160 : index
    %c0_5 = arith.constant 0 : index
    %11 = vector.load %arg1[%c160, %c0_5] : memref<256x32xf32, #tpu.memory_space<vmem>>, vector<16x1xf32>
    %c176 = arith.constant 176 : index
    %c0_6 = arith.constant 0 : index
    %12 = vector.load %arg1[%c176, %c0_6] : memref<256x32xf32, #tpu.memory_space<vmem>>, vector<16x1xf32>
    %cst_7 = arith.constant 0.000000e+00 : f32
    %13 = vector.shape_cast %10 : vector<1x128xi1> to vector<1x128xi1>
    %14 = vector.broadcast %13 : vector<1x128xi1> to vector<16x128xi1>
    %15 = vector.broadcast %cst_7 : f32 to vector<16x128xf32>
    %16 = arith.select %14, %7, %15 : vector<16x128xi1>, vector<16x128xf32>
    %cst_8 = arith.constant dense<0.000000e+00> : vector<16xf32>
    %17 = vector.multi_reduction <add>, %16, %cst_8 [1] : vector<16x128xf32> to vector<16xf32>
    %18 = vector.shape_cast %17 : vector<16xf32> to vector<16x1xf32>
    %cst_9 = arith.constant 6.250000e-02 : f32
    %19 = vector.broadcast %cst_9 : f32 to vector<16x1xf32>
    %20 = arith.mulf %18, %19 : vector<16x1xf32>
    %21 = vector.broadcast %20 : vector<16x1xf32> to vector<16x128xf32>
    %22 = arith.subf %7, %21 : vector<16x128xf32>
    %cst_10 = arith.constant 0.000000e+00 : f32
    %23 = vector.shape_cast %10 : vector<1x128xi1> to vector<1x128xi1>
    %24 = vector.broadcast %23 : vector<1x128xi1> to vector<16x128xi1>
    %25 = vector.broadcast %cst_10 : f32 to vector<16x128xf32>
    %26 = arith.select %24, %22, %25 : vector<16x128xi1>, vector<16x128xf32>
    %27 = arith.mulf %26, %26 : vector<16x128xf32>
    %cst_11 = arith.constant dense<0.000000e+00> : vector<16xf32>
    %28 = vector.multi_reduction <add>, %27, %cst_11 [1] : vector<16x128xf32> to vector<16xf32>
    %29 = vector.shape_cast %28 : vector<16xf32> to vector<16x1xf32>
    %cst_12 = arith.constant 6.250000e-02 : f32
    %30 = vector.broadcast %cst_12 : f32 to vector<16x1xf32>
    %31 = arith.mulf %29, %30 : vector<16x1xf32>
    %cst_13 = arith.constant 9.99999974E-6 : f32
    %32 = vector.broadcast %cst_13 : f32 to vector<16x1xf32>
    %33 = arith.addf %31, %32 : vector<16x1xf32>
    %34 = math.rsqrt %33 : vector<16x1xf32>
    %35 = arith.mulf %11, %34 : vector<16x1xf32>
    %36 = vector.broadcast %35 : vector<16x1xf32> to vector<16x128xf32>
    %37 = arith.mulf %7, %36 : vector<16x128xf32>
    %38 = arith.mulf %20, %35 : vector<16x1xf32>
    %39 = arith.subf %12, %38 : vector<16x1xf32>
    %40 = vector.broadcast %39 : vector<16x1xf32> to vector<16x128xf32>
    %41 = arith.addf %37, %40 : vector<16x128xf32>
    %c16 = arith.constant 16 : index
    %c0_14 = arith.constant 0 : index
    %42 = vector.load %arg1[%c16, %c0_14] : memref<256x32xf32, #tpu.memory_space<vmem>>, vector<32x16xf32>
    %cst_15 = arith.constant dense<0.000000e+00> : vector<32x128xf32>
    %43 = tpu.matmul %42, %41, %cst_15 {dimension_numbers = #tpu.dot_dimension_numbers<[1], [0], [0], [1], [0, 0, 1, 1], [], []>} : vector<32x16xf32>, vector<16x128xf32>, vector<32x128xf32> -> vector<32x128xf32>
    %c96 = arith.constant 96 : index
    %c0_16 = arith.constant 0 : index
    %44 = vector.load %arg1[%c96, %c0_16] : memref<256x32xf32, #tpu.memory_space<vmem>>, vector<32x1xf32>
    %45 = vector.broadcast %44 : vector<32x1xf32> to vector<32x128xf32>
    %46 = arith.addf %43, %45 : vector<32x128xf32>
    %cst_17 = arith.constant 0.000000e+00 : f32
    %47 = vector.broadcast %cst_17 : f32 to vector<32x128xf32>
    %48 = arith.maximumf %46, %47 : vector<32x128xf32>
    %c192 = arith.constant 192 : index
    %c0_18 = arith.constant 0 : index
    %49 = vector.load %arg1[%c192, %c0_18] : memref<256x32xf32, #tpu.memory_space<vmem>>, vector<32x1xf32>
    %c224 = arith.constant 224 : index
    %c0_19 = arith.constant 0 : index
    %50 = vector.load %arg1[%c224, %c0_19] : memref<256x32xf32, #tpu.memory_space<vmem>>, vector<32x1xf32>
    %cst_20 = arith.constant 0.000000e+00 : f32
    %51 = vector.shape_cast %10 : vector<1x128xi1> to vector<1x128xi1>
    %52 = vector.broadcast %51 : vector<1x128xi1> to vector<32x128xi1>
    %53 = vector.broadcast %cst_20 : f32 to vector<32x128xf32>
    %54 = arith.select %52, %48, %53 : vector<32x128xi1>, vector<32x128xf32>
    %cst_21 = arith.constant dense<0.000000e+00> : vector<32xf32>
    %55 = vector.multi_reduction <add>, %54, %cst_21 [1] : vector<32x128xf32> to vector<32xf32>
    %56 = vector.shape_cast %55 : vector<32xf32> to vector<32x1xf32>
    %cst_22 = arith.constant 6.250000e-02 : f32
    %57 = vector.broadcast %cst_22 : f32 to vector<32x1xf32>
    %58 = arith.mulf %56, %57 : vector<32x1xf32>
    %59 = vector.broadcast %58 : vector<32x1xf32> to vector<32x128xf32>
    %60 = arith.subf %48, %59 : vector<32x128xf32>
    %cst_23 = arith.constant 0.000000e+00 : f32
    %61 = vector.shape_cast %10 : vector<1x128xi1> to vector<1x128xi1>
    %62 = vector.broadcast %61 : vector<1x128xi1> to vector<32x128xi1>
    %63 = vector.broadcast %cst_23 : f32 to vector<32x128xf32>
    %64 = arith.select %62, %60, %63 : vector<32x128xi1>, vector<32x128xf32>
    %65 = arith.mulf %64, %64 : vector<32x128xf32>
    %cst_24 = arith.constant dense<0.000000e+00> : vector<32xf32>
    %66 = vector.multi_reduction <add>, %65, %cst_24 [1] : vector<32x128xf32> to vector<32xf32>
    %67 = vector.shape_cast %66 : vector<32xf32> to vector<32x1xf32>
    %cst_25 = arith.constant 6.250000e-02 : f32
    %68 = vector.broadcast %cst_25 : f32 to vector<32x1xf32>
    %69 = arith.mulf %67, %68 : vector<32x1xf32>
    %cst_26 = arith.constant 9.99999974E-6 : f32
    %70 = vector.broadcast %cst_26 : f32 to vector<32x1xf32>
    %71 = arith.addf %69, %70 : vector<32x1xf32>
    %72 = math.rsqrt %71 : vector<32x1xf32>
    %73 = arith.mulf %49, %72 : vector<32x1xf32>
    %74 = vector.broadcast %73 : vector<32x1xf32> to vector<32x128xf32>
    %75 = arith.mulf %48, %74 : vector<32x128xf32>
    %76 = arith.mulf %58, %73 : vector<32x1xf32>
    %77 = arith.subf %50, %76 : vector<32x1xf32>
    %78 = vector.broadcast %77 : vector<32x1xf32> to vector<32x128xf32>
    %79 = arith.addf %75, %78 : vector<32x128xf32>
    %c48 = arith.constant 48 : index
    %c0_27 = arith.constant 0 : index
    %80 = vector.load %arg1[%c48, %c0_27] : memref<256x32xf32, #tpu.memory_space<vmem>>, vector<24x32xf32>
    %cst_28 = arith.constant dense<0.000000e+00> : vector<24x128xf32>
    %81 = tpu.matmul %80, %79, %cst_28 {dimension_numbers = #tpu.dot_dimension_numbers<[1], [0], [0], [1], [0, 0, 1, 1], [], []>} : vector<24x32xf32>, vector<32x128xf32>, vector<24x128xf32> -> vector<24x128xf32>
    %c128 = arith.constant 128 : index
    %c0_29 = arith.constant 0 : index
    %82 = vector.load %arg1[%c128, %c0_29] : memref<256x32xf32, #tpu.memory_space<vmem>>, vector<24x1xf32>
    %83 = vector.broadcast %82 : vector<24x1xf32> to vector<24x128xf32>
    %84 = arith.addf %81, %83 : vector<24x128xf32>
    %cst_30 = arith.constant 0.000000e+00 : f32
    %85 = vector.broadcast %cst_30 : f32 to vector<24x128xf32>
    %86 = arith.maximumf %84, %85 : vector<24x128xf32>
    %c72 = arith.constant 72 : index
    %c0_31 = arith.constant 0 : index
    %87 = vector.load %arg1[%c72, %c0_31] : memref<256x32xf32, #tpu.memory_space<vmem>>, vector<1x24xf32>
    %cst_32 = arith.constant dense<0.000000e+00> : vector<1x128xf32>
    %88 = tpu.matmul %87, %86, %cst_32 {dimension_numbers = #tpu.dot_dimension_numbers<[1], [0], [0], [1], [0, 0, 1, 1], [], []>} : vector<1x24xf32>, vector<24x128xf32>, vector<1x128xf32> -> vector<1x128xf32>
    %c152 = arith.constant 152 : index
    %c0_33 = arith.constant 0 : index
    %89 = vector.load %arg1[%c152, %c0_33] : memref<256x32xf32, #tpu.memory_space<vmem>>, vector<1x1xf32>
    %90 = vector.broadcast %89 : vector<1x1xf32> to vector<1x128xf32>
    %91 = arith.addf %88, %90 : vector<1x128xf32>
    %c0_34 = arith.constant 0 : index
    %c0_35 = arith.constant 0 : index
    %92 = vector.load %arg3[%c0_34, %c0_35] : memref<1x128xf32, #tpu.memory_space<vmem>>, vector<1x128xf32>
    tpu.vector_store %arg3[%c0_34, %c0_35], %91 {strides = array<i32>} : memref<1x128xf32, #tpu.memory_space<vmem>>, vector<1x128xf32>,
    return
  }
  func.func @transform_0(%arg0: i32) -> (i32, i32) {
    %c0_i32 = arith.constant 0 : i32
    %c0_i32_0 = arith.constant 0 : i32
    %c0_i32_1 = arith.constant 0 : i32
    return %c0_i32, %c0_i32_0 : i32, i32
  }
  func.func @transform_1(%arg0: i32) -> (i32, i32) {
    %c0_i32 = arith.constant 0 : i32
    %c0_i32_0 = arith.constant 0 : i32
    %c0_i32_1 = arith.constant 0 : i32
    return %c0_i32, %c0_i32_0 : i32, i32
  }
  func.func @transform_2(%arg0: i32) -> (i32, i32) {
    %c0_i32 = arith.constant 0 : i32
    %c0_i32_0 = arith.constant 0 : i32
    %c0_i32_1 = arith.constant 0 : i32
    return %c0_i32, %c0_i32_0 : i32, i32
  }
}

</mosaic_0001>

<llo_original>
// kernel: ann_wine_forward.1
$region0: #{ann_wine_forward.1}
  #allocation0 [shape = 'u32[]', space=smem, size = 0x4, offset = 0x4, fixed_abs, tag = 'smem constant byte address 0x4 - core index']
  #allocation1 [shape = 'u32[144,128]{1,0:T(1,128)}', space=vmem, size = 0x12000, scoped, tag = 'internal scratch']
  %s0 = inlined_call_operand.vmem [shape: f32[256,32], index: 0, kind: input, shape index: {}]
  %s1 = inlined_call_operand.vmem [shape: f32[128,16], index: 1, kind: input, shape index: {}]
  %s2 = inlined_call_operand.vmem [shape: f32[1,128], index: 2, kind: output, shape index: {}]
  %s3 = sld [smem:[#allocation0]]
  $region18: #{ann_wine_forward.1} parent=0
    _
  %s5 = ssub.s32 1, %s3
  %s6 = scalar_select 0, %s5, %s3
  // Predicated region
  $region2: #{ann_wine_forward.1} parent=0 // pred_check
    _
  $region3: #{ann_wine_forward.1} parent=0 // pred_check_branch
    %8 = sbr.rel (0) target = $region5
  $region4: #{ann_wine_forward.1} parent=0 // pred_region
    _
  $region5: #{ann_wine_forward.1} parent=0 // pred_fallthru
    _
  // Predicated region
  $region6: #{ann_wine_forward.1} parent=0 // pred_check
    _
  $region7: #{ann_wine_forward.1} parent=0 // pred_check_branch
    %10 = sbr.rel (0) target = $region9
  $region8: #{ann_wine_forward.1} parent=0 // pred_region
    _
  $region9: #{ann_wine_forward.1} parent=0 // pred_fallthru
    _
  %v11 = vld [vmem:[%s1] sm:$0xff]
  %v12 = vld [vmem:[%s1 + $0x8] sm:$0xff]
  %v13 = vld [vmem:[%s1 + $0x10] sm:$0xff]
  %v14 = vld [vmem:[%s1 + $0x18] sm:$0xff]
  %v15 = vld [vmem:[%s1 + $0x20] sm:$0xff]
  %v16 = vld [vmem:[%s1 + $0x28] sm:$0xff]
  %v17 = vld [vmem:[%s1 + $0x30] sm:$0xff]
  %v18 = vld [vmem:[%s1 + $0x38] sm:$0xff]
  %v19 = vld [vmem:[%s1 + $0x40] sm:$0xff]
  %v20 = vld [vmem:[%s1 + $0x48] sm:$0xff]
  %v21 = vld [vmem:[%s1 + $0x50] sm:$0xff]
  %v22 = vld [vmem:[%s1 + $0x58] sm:$0xff]
  %v23 = vld [vmem:[%s1 + $0x60] sm:$0xff]
  %v24 = vld [vmem:[%s1 + $0x68] sm:$0xff]
  %v25 = vld [vmem:[%s1 + $0x70] sm:$0xff]
  %v26 = vld [vmem:[%s1 + $0x78] sm:$0xff]
  %v27 = vld [vmem:[%s0] sm:$0xff]
  %v28 = vld [vmem:[%s0 + $0x8] sm:$0xff]
  %v29 = vld [vmem:[%s0 + $0x50] sm:$0xff]
  %v30 = vld [vmem:[%s0 + $0x58] sm:$0xff]
  %32 = vset.pattern.permute.xlu0 0
  %33 = vperm.xlu0 %32, %v29
  %v34 = vpop.permute.xlu0 %33
  %37 = vset.pattern.permute.xlu0 0
  %38 = vperm.xlu0 %37, %v30
  %v39 = vpop.permute.xlu0 %38
  %vm41 = vcmask 130048
  %v43 = vsel %vm41, %v27, 0
  %v46 = vsel %vm41, %v28, 0
  %v49 = vsel %vm41, %v11, 0
  %v52 = vsel %vm41, %v12, 0
  %v55 = vsel %vm41, %v13, 0
  %v58 = vsel %vm41, %v14, 0
  %v61 = vsel %vm41, %v15, 0
  %v64 = vsel %vm41, %v16, 0
  %v67 = vsel %vm41, %v17, 0
  %v70 = vsel %vm41, %v18, 0
  %v73 = vsel %vm41, %v19, 0
  %v76 = vsel %vm41, %v20, 0
  %v79 = vsel %vm41, %v21, 0
  %v82 = vsel %vm41, %v22, 0
  %v85 = vsel %vm41, %v23, 0
  %v88 = vsel %vm41, %v24, 0
  %v91 = vsel %vm41, %v25, 0
  %v94 = vsel %vm41, %v26, 0
  %96 = vmatprep.subr.mxu0 0.0
  %97 = vmatpush1.xpose.msra.mxu0 %v49
  %98 = vmatprep.subr.mxu0 0.0
  %99 = vmatpush1.xpose.msra.mxu0 %v52
  %100 = vmatprep.subr.mxu0 0.0
  %101 = vmatpush1.xpose.msra.mxu0 %v55
  %102 = vmatprep.subr.mxu0 0.0
  %103 = vmatpush1.xpose.msra.mxu0 %v58
  %104 = vmatprep.subr.mxu0 0.0
  %105 = vmatpush1.xpose.msra.mxu0 %v61
  %106 = vmatprep.subr.mxu0 0.0
  %107 = vmatpush1.xpose.msra.mxu0 %v64
  %108 = vmatprep.subr.mxu0 0.0
  %109 = vmatpush1.xpose.msra.mxu0 %v67
  %110 = vmatprep.subr.mxu0 0.0
  %111 = vmatpush1.xpose.msra.mxu0 %v70
  %112 = vmatprep.subr.mxu0 0.0
  %113 = vmatpush1.xpose.msra.mxu0 %v73
  %114 = vmatprep.subr.mxu0 0.0
  %115 = vmatpush1.xpose.msra.mxu0 %v76
  %116 = vmatprep.subr.mxu0 0.0
  %117 = vmatpush1.xpose.msra.mxu0 %v79
  %118 = vmatprep.subr.mxu0 0.0
  %119 = vmatpush1.xpose.msra.mxu0 %v82
  %120 = vmatprep.subr.mxu0 0.0
  %121 = vmatpush1.xpose.msra.mxu0 %v85
  %122 = vmatprep.subr.mxu0 0.0
  %123 = vmatpush1.xpose.msra.mxu0 %v88
  %124 = vmatprep.subr.mxu0 0.0
  %125 = vmatpush1.xpose.msra.mxu0 %v91
  %126 = vmatprep.subr.mxu0 0.0
  %127 = vmatpush1.xpose.msra.mxu0 %v94
  %128 = vmatprep.subr.mxu0 0.0
  %129 = vmatpush1.xpose.msra.mxu0 0.0
  %130 = vmatprep.subr.mxu0 0.0
  %131 = vmatpush1.xpose.msra.mxu0 0.0
  %132 = vmatprep.subr.mxu0 0.0
  %133 = vmatpush1.xpose.msra.mxu0 0.0
  %134 = vmatprep.subr.mxu0 0.0
  %135 = vmatpush1.xpose.msra.mxu0 0.0
  %136 = vmatprep.subr.mxu0 0.0
  %137 = vmatpush1.xpose.msra.mxu0 0.0
  %138 = vmatprep.subr.mxu0 0.0
  %139 = vmatpush1.xpose.msra.mxu0 0.0
  %140 = vmatprep.subr.mxu0 0.0
  %141 = vmatpush1.xpose.msra.mxu0 0.0
  %142 = vmatprep.subr.mxu0 0.0
  %143 = vmatpush1.xpose.msra.mxu0 0.0
  %144 = vmatprep.subr.mxu0 0.0
  %145 = vmatpush1.xpose.msra.mxu0 0.0
  %146 = vmatprep.subr.mxu0 0.0
  %147 = vmatpush1.xpose.msra.mxu0 0.0
  %148 = vmatprep.subr.mxu0 0.0
  %149 = vmatpush1.xpose.msra.mxu0 0.0
  %150 = vmatprep.subr.mxu0 0.0
  %151 = vmatpush1.xpose.msra.mxu0 0.0
  %152 = vmatprep.subr.mxu0 0.0
  %153 = vmatpush1.xpose.msra.mxu0 0.0
  %154 = vmatprep.subr.mxu0 0.0
  %155 = vmatpush1.xpose.msra.mxu0 0.0
  %156 = vmatprep.subr.mxu0 0.0
  %157 = vmatpush1.xpose.msra.mxu0 0.0
  %158 = vmatprep.subr.mxu0 0.0
  %159 = vmatpush1.xpose.msra.mxu0 0.0
  %160 = vmatprep.mubr.f32.mxu0 0.0
  %161 = vmatmul.mubr.f32.gmra.mrb[0].mxu0 %v43
  %v162 = vpop.f32.mrb[0].mxu0
  %v163 = vadd.f32 %v34, %v162
  %v164 = vpop.f32.mrb[0].mxu0
  %165 = vmatprep.mubr.f32.mxu0 0.0
  %166 = vmatmul.mubr.f32.gmra.mrb[0].mxu0 %v46
  %v167 = vpop.f32.mrb[0].mxu0
  %v168 = vadd.f32 %v39, %v167
  %v169 = vpop.f32.mrb[0].mxu0
  %170 = vdwg.mxu0
  %v171 = vmax.f32 %v163, 0.0
  %v172 = vmax.f32 %v168, 0.0
  %v173 = vlaneseq
  %v174 = vand.u32 %v173, 127
  %vm175 = vcmp.lt.s32.totalorder %v174, 16
  %v176 = vld [vmem:[%s0 + $0xa0] sm:$0xff]
  %v177 = vld [vmem:[%s0 + $0xa8] sm:$0xff]
  %v178 = vld [vmem:[%s0 + $0xb0] sm:$0xff]
  %v179 = vld [vmem:[%s0 + $0xb8] sm:$0xff]
  %v180 = vsel %vm175, 1, 0
  %vm181 = vcmp.eq.s32.totalorder %v180, 1
  %v182 = vsel %vm181, %v171, 0.0
  %v183 = vsel %vm181, %v172, 0.0
  %184 = vadd.xlane.f32.xlu0 %v182
  %v185 = vpop.xlane.xlu0 %184
  %186 = vadd.xlane.f32.xlu0 %v183
  %v187 = vpop.xlane.xlu0 %186
  %v188 = vmul.f32 %v185, 0.0625
  %v189 = vmul.f32 %v187, 0.0625
  %v190 = vsub.f32 %v171, %v188
  %v191 = vsub.f32 %v172, %v189
  %v192 = vsel %vm181, %v190, 0.0
  %v193 = vsel %vm181, %v191, 0.0
  %v194 = vmul.f32 %v192, %v192
  %v195 = vmul.f32 %v193, %v193
  %196 = vadd.xlane.f32.xlu0 %v194
  %v197 = vpop.xlane.xlu0 %196
  %198 = vadd.xlane.f32.xlu0 %v195
  %v199 = vpop.xlane.xlu0 %198
  %v200 = vmul.f32 %v197, 0.0625
  %v201 = vmul.f32 %v199, 0.0625
  %v202 = vadd.f32 %v200, 1e-05
  %v203 = vadd.f32 %v201, 1e-05
  %v204 = vrsqrt.pop %v202
  %v205 = vrsqrt.pop %v203
  %v206 = vmul.f32 %v176, %v204
  %v207 = vmul.f32 %v177, %v205
  %209 = vset.pattern.permute.xlu0 0
  %210 = vperm.xlu0 %209, %v206
  %v211 = vpop.permute.xlu0 %210
  %214 = vset.pattern.permute.xlu0 0
  %215 = vperm.xlu0 %214, %v207
  %v216 = vpop.permute.xlu0 %215
  %v218 = vmul.f32 %v171, %v211
  %v219 = vmul.f32 %v172, %v216
  %v220 = vmul.f32 %v188, %v206
  %v221 = vmul.f32 %v189, %v207
  %v222 = vsub.f32 %v178, %v220
  %v223 = vsub.f32 %v179, %v221
  %225 = vset.pattern.permute.xlu0 0
  %226 = vperm.xlu0 %225, %v222
  %v227 = vpop.permute.xlu0 %226
  %230 = vset.pattern.permute.xlu0 0
  %231 = vperm.xlu0 %230, %v223
  %v232 = vpop.permute.xlu0 %231
  %v234 = vadd.f32 %v218, %v227
  %v235 = vadd.f32 %v219, %v232
  %v236 = vld [vmem:[%s0 + $0x10] sm:$0xff]
  %v237 = vld [vmem:[%s0 + $0x18] sm:$0xff]
  %v238 = vld [vmem:[%s0 + $0x20] sm:$0xff]
  %v239 = vld [vmem:[%s0 + $0x28] sm:$0xff]
  %v240 = vld [vmem:[%s0 + $0x60] sm:$0xff]
  %v241 = vld [vmem:[%s0 + $0x68] sm:$0xff]
  %v242 = vld [vmem:[%s0 + $0x70] sm:$0xff]
  %v243 = vld [vmem:[%s0 + $0x78] sm:$0xff]
  %245 = vset.pattern.permute.xlu0 0
  %246 = vperm.xlu0 %245, %v240
  %v247 = vpop.permute.xlu0 %246
  %250 = vset.pattern.permute.xlu0 0
  %251 = vperm.xlu0 %250, %v241
  %v252 = vpop.permute.xlu0 %251
  %255 = vset.pattern.permute.xlu0 0
  %256 = vperm.xlu0 %255, %v242
  %v257 = vpop.permute.xlu0 %256
  %260 = vset.pattern.permute.xlu0 0
  %261 = vperm.xlu0 %260, %v243
  %v262 = vpop.permute.xlu0 %261
  %v265 = vsel %vm41, %v236, 0
  %v268 = vsel %vm41, %v237, 0
  %v271 = vsel %vm41, %v238, 0
  %v274 = vsel %vm41, %v239, 0
  %276 = vmatprep.subr.mxu0 0.0
  %277 = vmatpush1.msra.mxu0 %v234
  %278 = vmatprep.subr.mxu0 0.0
  %279 = vmatpush1.msra.mxu0 %v235
  %280 = vmatprep.subr.mxu0 0.0
  %281 = vmatpush1.msra.mxu0 0.0
  %282 = vmatprep.subr.mxu0 0.0
  %283 = vmatpush1.msra.mxu0 0.0
  %284 = vmatprep.subr.mxu0 0.0
  %285 = vmatpush1.msra.mxu0 0.0
  %286 = vmatprep.subr.mxu0 0.0
  %287 = vmatpush1.msra.mxu0 0.0
  %288 = vmatprep.subr.mxu0 0.0
  %289 = vmatpush1.msra.mxu0 0.0
  %290 = vmatprep.subr.mxu0 0.0
  %291 = vmatpush1.msra.mxu0 0.0
  %292 = vmatprep.subr.mxu0 0.0
  %293 = vmatpush1.msra.mxu0 0.0
  %294 = vmatprep.subr.mxu0 0.0
  %295 = vmatpush1.msra.mxu0 0.0
  %296 = vmatprep.subr.mxu0 0.0
  %297 = vmatpush1.msra.mxu0 0.0
  %298 = vmatprep.subr.mxu0 0.0
  %299 = vmatpush1.msra.mxu0 0.0
  %300 = vmatprep.subr.mxu0 0.0
  %301 = vmatpush1.msra.mxu0 0.0
  %302 = vmatprep.subr.mxu0 0.0
  %303 = vmatpush1.msra.mxu0 0.0
  %304 = vmatprep.subr.mxu0 0.0
  %305 = vmatpush1.msra.mxu0 0.0
  %306 = vmatprep.subr.mxu0 0.0
  %307 = vmatpush1.msra.mxu0 0.0
  %308 = vmatprep.subr.mxu0 0.0
  %309 = vmatpush1.msra.mxu0 0.0
  %310 = vmatprep.subr.mxu0 0.0
  %311 = vmatpush1.msra.mxu0 0.0
  %312 = vmatprep.subr.mxu0 0.0
  %313 = vmatpush1.msra.mxu0 0.0
  %314 = vmatprep.subr.mxu0 0.0
  %315 = vmatpush1.msra.mxu0 0.0
  %316 = vmatprep.subr.mxu0 0.0
  %317 = vmatpush1.msra.mxu0 0.0
  %318 = vmatprep.subr.mxu0 0.0
  %319 = vmatpush1.msra.mxu0 0.0
  %320 = vmatprep.subr.mxu0 0.0
  %321 = vmatpush1.msra.mxu0 0.0
  %322 = vmatprep.subr.mxu0 0.0
  %323 = vmatpush1.msra.mxu0 0.0
  %324 = vmatprep.subr.mxu0 0.0
  %325 = vmatpush1.msra.mxu0 0.0
  %326 = vmatprep.subr.mxu0 0.0
  %327 = vmatpush1.msra.mxu0 0.0
  %328 = vmatprep.subr.mxu0 0.0
  %329 = vmatpush1.msra.mxu0 0.0
  %330 = vmatprep.subr.mxu0 0.0
  %331 = vmatpush1.msra.mxu0 0.0
  %332 = vmatprep.subr.mxu0 0.0
  %333 = vmatpush1.msra.mxu0 0.0
  %334 = vmatprep.subr.mxu0 0.0
  %335 = vmatpush1.msra.mxu0 0.0
  %336 = vmatprep.subr.mxu0 0.0
  %337 = vmatpush1.msra.mxu0 0.0
  %338 = vmatprep.subr.mxu0 0.0
  %339 = vmatpush1.msra.mxu0 0.0
  %340 = vmatprep.mubr.f32.mxu0 0.0
  %341 = vmatmul.mubr.f32.gmra.mrb[0].mxu0 %v265
  %v342 = vpop.f32.mrb[0].mxu0
  %v343 = vadd.f32 %v247, %v342
  %v344 = vpop.f32.mrb[0].mxu0
  %345 = vmatprep.mubr.f32.mxu0 0.0
  %346 = vmatmul.mubr.f32.gmra.mrb[0].mxu0 %v268
  %v347 = vpop.f32.mrb[0].mxu0
  %v348 = vadd.f32 %v252, %v347
  %v349 = vpop.f32.mrb[0].mxu0
  %350 = vmatprep.mubr.f32.mxu0 0.0
  %351 = vmatmul.mubr.f32.gmra.mrb[0].mxu0 %v271
  %v352 = vpop.f32.mrb[0].mxu0
  %v353 = vadd.f32 %v257, %v352
  %v354 = vpop.f32.mrb[0].mxu0
  %355 = vmatprep.mubr.f32.mxu0 0.0
  %356 = vmatmul.mubr.f32.gmra.mrb[0].mxu0 %v274
  %v357 = vpop.f32.mrb[0].mxu0
  %v358 = vadd.f32 %v262, %v357
  %v359 = vpop.f32.mrb[0].mxu0
  %360 = vdwg.mxu0
  %v361 = vmax.f32 %v343, 0.0
  %v362 = vmax.f32 %v348, 0.0
  %v363 = vmax.f32 %v353, 0.0
  %v364 = vmax.f32 %v358, 0.0
  %v365 = vld [vmem:[%s0 + $0xc0] sm:$0xff]
  %v366 = vld [vmem:[%s0 + $0xc8] sm:$0xff]
  %v367 = vld [vmem:[%s0 + $0xd0] sm:$0xff]
  %v368 = vld [vmem:[%s0 + $0xd8] sm:$0xff]
  %v369 = vld [vmem:[%s0 + $0xe0] sm:$0xff]
  %v370 = vld [vmem:[%s0 + $0xe8] sm:$0xff]
  %v371 = vld [vmem:[%s0 + $0xf0] sm:$0xff]
  %v372 = vld [vmem:[%s0 + $0xf8] sm:$0xff]
  %v373 = vsel %vm181, %v361, 0.0
  %v374 = vsel %vm181, %v362, 0.0
  %v375 = vsel %vm181, %v363, 0.0
  %v376 = vsel %vm181, %v364, 0.0
  %377 = vadd.xlane.f32.xlu0 %v373
  %v378 = vpop.xlane.xlu0 %377
  %379 = vadd.xlane.f32.xlu0 %v374
  %v380 = vpop.xlane.xlu0 %379
  %381 = vadd.xlane.f32.xlu0 %v375
  %v382 = vpop.xlane.xlu0 %381
  %383 = vadd.xlane.f32.xlu0 %v376
  %v384 = vpop.xlane.xlu0 %383
  %v385 = vmul.f32 %v378, 0.0625
  %v386 = vmul.f32 %v380, 0.0625
  %v387 = vmul.f32 %v382, 0.0625
  %v388 = vmul.f32 %v384, 0.0625
  %v389 = vsub.f32 %v361, %v385
  %v390 = vsub.f32 %v362, %v386
  %v391 = vsub.f32 %v363, %v387
  %v392 = vsub.f32 %v364, %v388
  %v393 = vsel %vm181, %v389, 0.0
  %v394 = vsel %vm181, %v390, 0.0
  %v395 = vsel %vm181, %v391, 0.0
  %v396 = vsel %vm181, %v392, 0.0
  %v397 = vmul.f32 %v393, %v393
  %v398 = vmul.f32 %v394, %v394
  %v399 = vmul.f32 %v395, %v395
  %v400 = vmul.f32 %v396, %v396
  %401 = vadd.xlane.f32.xlu0 %v397
  %v402 = vpop.xlane.xlu0 %401
  %403 = vadd.xlane.f32.xlu0 %v398
  %v404 = vpop.xlane.xlu0 %403
  %405 = vadd.xlane.f32.xlu0 %v399
  %v406 = vpop.xlane.xlu0 %405
  %407 = vadd.xlane.f32.xlu0 %v400
  %v408 = vpop.xlane.xlu0 %407
  %v409 = vmul.f32 %v402, 0.0625
  %v410 = vmul.f32 %v404, 0.0625
  %v411 = vmul.f32 %v406, 0.0625
  %v412 = vmul.f32 %v408, 0.0625
  %v413 = vadd.f32 %v409, 1e-05
  %v414 = vadd.f32 %v410, 1e-05
  %v415 = vadd.f32 %v411, 1e-05
  %v416 = vadd.f32 %v412, 1e-05
  %v417 = vrsqrt.pop %v413
  %v418 = vrsqrt.pop %v414
  %v419 = vrsqrt.pop %v415
  %v420 = vrsqrt.pop %v416
  %v421 = vmul.f32 %v365, %v417
  %v422 = vmul.f32 %v366, %v418
  %v423 = vmul.f32 %v367, %v419
  %v424 = vmul.f32 %v368, %v420
  %426 = vset.pattern.permute.xlu0 0
  %427 = vperm.xlu0 %426, %v421
  %v428 = vpop.permute.xlu0 %427
  %431 = vset.pattern.permute.xlu0 0
  %432 = vperm.xlu0 %431, %v422
  %v433 = vpop.permute.xlu0 %432
  %436 = vset.pattern.permute.xlu0 0
  %437 = vperm.xlu0 %436, %v423
  %v438 = vpop.permute.xlu0 %437
  %441 = vset.pattern.permute.xlu0 0
  %442 = vperm.xlu0 %441, %v424
  %v443 = vpop.permute.xlu0 %442
  %v445 = vmul.f32 %v361, %v428
  %v446 = vmul.f32 %v362, %v433
  %v447 = vmul.f32 %v363, %v438
  %v448 = vmul.f32 %v364, %v443
  %v449 = vmul.f32 %v385, %v421
  %v450 = vmul.f32 %v386, %v422
  %v451 = vmul.f32 %v387, %v423
  %v452 = vmul.f32 %v388, %v424
  %v453 = vsub.f32 %v369, %v449
  %v454 = vsub.f32 %v370, %v450
  %v455 = vsub.f32 %v371, %v451
  %v456 = vsub.f32 %v372, %v452
  %458 = vset.pattern.permute.xlu0 0
  %459 = vperm.xlu0 %458, %v453
  %v460 = vpop.permute.xlu0 %459
  %463 = vset.pattern.permute.xlu0 0
  %464 = vperm.xlu0 %463, %v454
  %v465 = vpop.permute.xlu0 %464
  %468 = vset.pattern.permute.xlu0 0
  %469 = vperm.xlu0 %468, %v455
  %v470 = vpop.permute.xlu0 %469
  %473 = vset.pattern.permute.xlu0 0
  %474 = vperm.xlu0 %473, %v456
  %v475 = vpop.permute.xlu0 %474
  %v477 = vadd.f32 %v445, %v460
  %v478 = vadd.f32 %v446, %v465
  %v479 = vadd.f32 %v447, %v470
  %v480 = vadd.f32 %v448, %v475
  %v481 = vld [vmem:[%s0 + $0x30] sm:$0xff]
  %v482 = vld [vmem:[%s0 + $0x38] sm:$0xff]
  %v483 = vld [vmem:[%s0 + $0x40] sm:$0xff]
  %v484 = vld [vmem:[%s0 + $0x80] sm:$0xff]
  %v485 = vld [vmem:[%s0 + $0x88] sm:$0xff]
  %v486 = vld [vmem:[%s0 + $0x90] sm:$0xff]
  %488 = vset.pattern.permute.xlu0 0
  %489 = vperm.xlu0 %488, %v484
  %v490 = vpop.permute.xlu0 %489
  %493 = vset.pattern.permute.xlu0 0
  %494 = vperm.xlu0 %493, %v485
  %v495 = vpop.permute.xlu0 %494
  %498 = vset.pattern.permute.xlu0 0
  %499 = vperm.xlu0 %498, %v486
  %v500 = vpop.permute.xlu0 %499
  %vm502 = vcmask 261120
  %v504 = vsel %vm502, %v481, 0
  %v507 = vsel %vm502, %v482, 0
  %v510 = vsel %vm502, %v483, 0
  %512 = vmatprep.subr.mxu0 0.0
  %513 = vmatpush1.msra.mxu0 %v477
  %514 = vmatprep.subr.mxu0 0.0
  %515 = vmatpush1.msra.mxu0 %v478
  %516 = vmatprep.subr.mxu0 0.0
  %517 = vmatpush1.msra.mxu0 %v479
  %518 = vmatprep.subr.mxu0 0.0
  %519 = vmatpush1.msra.mxu0 %v480
  %520 = vmatprep.subr.mxu0 0.0
  %521 = vmatpush1.msra.mxu0 0.0
  %522 = vmatprep.subr.mxu0 0.0
  %523 = vmatpush1.msra.mxu0 0.0
  %524 = vmatprep.subr.mxu0 0.0
  %525 = vmatpush1.msra.mxu0 0.0
  %526 = vmatprep.subr.mxu0 0.0
  %527 = vmatpush1.msra.mxu0 0.0
  %528 = vmatprep.subr.mxu0 0.0
  %529 = vmatpush1.msra.mxu0 0.0
  %530 = vmatprep.subr.mxu0 0.0
  %531 = vmatpush1.msra.mxu0 0.0
  %532 = vmatprep.subr.mxu0 0.0
  %533 = vmatpush1.msra.mxu0 0.0
  %534 = vmatprep.subr.mxu0 0.0
  %535 = vmatpush1.msra.mxu0 0.0
  %536 = vmatprep.subr.mxu0 0.0
  %537 = vmatpush1.msra.mxu0 0.0
  %538 = vmatprep.subr.mxu0 0.0
  %539 = vmatpush1.msra.mxu0 0.0
  %540 = vmatprep.subr.mxu0 0.0
  %541 = vmatpush1.msra.mxu0 0.0
  %542 = vmatprep.subr.mxu0 0.0
  %543 = vmatpush1.msra.mxu0 0.0
  %544 = vmatprep.subr.mxu0 0.0
  %545 = vmatpush1.msra.mxu0 0.0
  %546 = vmatprep.subr.mxu0 0.0
  %547 = vmatpush1.msra.mxu0 0.0
  %548 = vmatprep.subr.mxu0 0.0
  %549 = vmatpush1.msra.mxu0 0.0
  %550 = vmatprep.subr.mxu0 0.0
  %551 = vmatpush1.msra.mxu0 0.0
  %552 = vmatprep.subr.mxu0 0.0
  %553 = vmatpush1.msra.mxu0 0.0
  %554 = vmatprep.subr.mxu0 0.0
  %555 = vmatpush1.msra.mxu0 0.0
  %556 = vmatprep.subr.mxu0 0.0
  %557 = vmatpush1.msra.mxu0 0.0
  %558 = vmatprep.subr.mxu0 0.0
  %559 = vmatpush1.msra.mxu0 0.0
  %560 = vmatprep.subr.mxu0 0.0
  %561 = vmatpush1.msra.mxu0 0.0
  %562 = vmatprep.subr.mxu0 0.0
  %563 = vmatpush1.msra.mxu0 0.0
  %564 = vmatprep.subr.mxu0 0.0
  %565 = vmatpush1.msra.mxu0 0.0
  %566 = vmatprep.subr.mxu0 0.0
  %567 = vmatpush1.msra.mxu0 0.0
  %568 = vmatprep.subr.mxu0 0.0
  %569 = vmatpush1.msra.mxu0 0.0
  %570 = vmatprep.subr.mxu0 0.0
  %571 = vmatpush1.msra.mxu0 0.0
  %572 = vmatprep.subr.mxu0 0.0
  %573 = vmatpush1.msra.mxu0 0.0
  %574 = vmatprep.subr.mxu0 0.0
  %575 = vmatpush1.msra.mxu0 0.0
  %576 = vmatprep.mubr.f32.mxu0 0.0
  %577 = vmatmul.mubr.f32.gmra.mrb[0].mxu0 %v504
  %v578 = vpop.f32.mrb[0].mxu0
  %v579 = vadd.f32 %v490, %v578
  %v580 = vpop.f32.mrb[0].mxu0
  %581 = vmatprep.mubr.f32.mxu0 0.0
  %582 = vmatmul.mubr.f32.gmra.mrb[0].mxu0 %v507
  %v583 = vpop.f32.mrb[0].mxu0
  %v584 = vadd.f32 %v495, %v583
  %v585 = vpop.f32.mrb[0].mxu0
  %586 = vmatprep.mubr.f32.mxu0 0.0
  %587 = vmatmul.mubr.f32.gmra.mrb[0].mxu0 %v510
  %v588 = vpop.f32.mrb[0].mxu0
  %v589 = vadd.f32 %v500, %v588
  %v590 = vpop.f32.mrb[0].mxu0
  %591 = vdwg.mxu0
  %v592 = vmax.f32 %v579, 0.0
  %v593 = vmax.f32 %v584, 0.0
  %v594 = vmax.f32 %v589, 0.0
  %v595 = vld [vmem:[%s0 + $0x48] sm:$0x1]
  %v596 = vld [vmem:[%s0 + $0x98] sm:$0x1]
  %598 = vset.pattern.permute.xlu0 0
  %599 = vperm.xlu0 %598, %v596
  %v600 = vpop.permute.xlu0 %599
  %vm602 = vcmask 195584
  %v604 = vsel %vm602, %v595, 0
  %606 = vmatprep.subr.mxu0 0.0
  %607 = vmatpush1.msra.mxu0 %v592
  %608 = vmatprep.subr.mxu0 0.0
  %609 = vmatpush1.msra.mxu0 %v593
  %610 = vmatprep.subr.mxu0 0.0
  %611 = vmatpush1.msra.mxu0 %v594
  %612 = vmatprep.subr.mxu0 0.0
  %613 = vmatpush1.msra.mxu0 0.0
  %614 = vmatprep.subr.mxu0 0.0
  %615 = vmatpush1.msra.mxu0 0.0
  %616 = vmatprep.subr.mxu0 0.0
  %617 = vmatpush1.msra.mxu0 0.0
  %618 = vmatprep.subr.mxu0 0.0
  %619 = vmatpush1.msra.mxu0 0.0
  %620 = vmatprep.subr.mxu0 0.0
  %621 = vmatpush1.msra.mxu0 0.0
  %622 = vmatprep.subr.mxu0 0.0
  %623 = vmatpush1.msra.mxu0 0.0
  %624 = vmatprep.subr.mxu0 0.0
  %625 = vmatpush1.msra.mxu0 0.0
  %626 = vmatprep.subr.mxu0 0.0
  %627 = vmatpush1.msra.mxu0 0.0
  %628 = vmatprep.subr.mxu0 0.0
  %629 = vmatpush1.msra.mxu0 0.0
  %630 = vmatprep.subr.mxu0 0.0
  %631 = vmatpush1.msra.mxu0 0.0
  %632 = vmatprep.subr.mxu0 0.0
  %633 = vmatpush1.msra.mxu0 0.0
  %634 = vmatprep.subr.mxu0 0.0
  %635 = vmatpush1.msra.mxu0 0.0
  %636 = vmatprep.subr.mxu0 0.0
  %637 = vmatpush1.msra.mxu0 0.0
  %638 = vmatprep.subr.mxu0 0.0
  %639 = vmatpush1.msra.mxu0 0.0
  %640 = vmatprep.subr.mxu0 0.0
  %641 = vmatpush1.msra.mxu0 0.0
  %642 = vmatprep.subr.mxu0 0.0
  %643 = vmatpush1.msra.mxu0 0.0
  %644 = vmatprep.subr.mxu0 0.0
  %645 = vmatpush1.msra.mxu0 0.0
  %646 = vmatprep.subr.mxu0 0.0
  %647 = vmatpush1.msra.mxu0 0.0
  %648 = vmatprep.subr.mxu0 0.0
  %649 = vmatpush1.msra.mxu0 0.0
  %650 = vmatprep.subr.mxu0 0.0
  %651 = vmatpush1.msra.mxu0 0.0
  %652 = vmatprep.subr.mxu0 0.0
  %653 = vmatpush1.msra.mxu0 0.0
  %654 = vmatprep.subr.mxu0 0.0
  %655 = vmatpush1.msra.mxu0 0.0
  %656 = vmatprep.subr.mxu0 0.0
  %657 = vmatpush1.msra.mxu0 0.0
  %658 = vmatprep.subr.mxu0 0.0
  %659 = vmatpush1.msra.mxu0 0.0
  %660 = vmatprep.subr.mxu0 0.0
  %661 = vmatpush1.msra.mxu0 0.0
  %662 = vmatprep.subr.mxu0 0.0
  %663 = vmatpush1.msra.mxu0 0.0
  %664 = vmatprep.subr.mxu0 0.0
  %665 = vmatpush1.msra.mxu0 0.0
  %666 = vmatprep.subr.mxu0 0.0
  %667 = vmatpush1.msra.mxu0 0.0
  %668 = vmatprep.subr.mxu0 0.0
  %669 = vmatpush1.msra.mxu0 0.0
  %670 = vmatprep.mubr.f32.mxu0 0.0
  %671 = vmatmul.mubr.f32.gmra.mrb[0].mxu0 %v604
  %v672 = vpop.f32.mrb[0].mxu0
  %v673 = vadd.f32 %v600, %v672
  %v674 = vpop.f32.mrb[0].mxu0
  %675 = vdwg.mxu0
  %676 = vst [vmem:[%s2] sm:$0x1] %v673
  // Predicated region
  $region10: #{ann_wine_forward.1} parent=0 // pred_check
    _
  $region11: #{ann_wine_forward.1} parent=0 // pred_check_branch
    %678 = sbr.rel (0) target = $region13
  $region12: #{ann_wine_forward.1} parent=0 // pred_region
    _
  $region13: #{ann_wine_forward.1} parent=0 // pred_fallthru
    _
  // Predicated region
  $region14: #{ann_wine_forward.1} parent=0 // pred_check
    _
  $region15: #{ann_wine_forward.1} parent=0 // pred_check_branch
    %680 = sbr.rel (0) target = $region17
  $region16: #{ann_wine_forward.1} parent=0 // pred_region
    _
  $region17: #{ann_wine_forward.1} parent=0 // pred_fallthru
    _

</llo_original>
